<compile_context>
chip_gen: v5e
topology: v5e:2x2
jax: 0.10.0
libtpu: 0.0.40
codegen_flags: <defaults>
</compile_context>

<pallas_src>
import jax
import jax.numpy as jnp
from jax.experimental import pallas as pl
from jax.experimental.pallas import tpu as pltpu


def beale_kernel(x1_ref, x2_ref, o_ref):
    # x1_ref, x2_ref: SMEM f32[1]; o_ref: SMEM f32[1]
    x1 = x1_ref[0]
    x2 = x2_ref[0]
    x2sq = x2 * x2
    x2cu = x2sq * x2
    t1 = 1.5 - x1 + x1 * x2
    t2 = 2.25 - x1 + x1 * x2sq
    t3 = 2.625 - x1 + x1 * x2cu
    o_ref[0] = t1 * t1 + t2 * t2 + t3 * t3


def _beale_pallas_raw(x1, x2):
    return pl.pallas_call(
        beale_kernel,
        out_shape=jax.ShapeDtypeStruct((1,), jnp.float32),
        in_specs=[
            pl.BlockSpec(memory_space=pltpu.SMEM),
            pl.BlockSpec(memory_space=pltpu.SMEM),
        ],
        out_specs=pl.BlockSpec(memory_space=pltpu.SMEM),
    )(x1.astype(jnp.float32), x2.astype(jnp.float32))


@jax.custom_vjp
def beale_pallas(x1, x2):
    """x1, x2: shape (1,) float32 parameter arrays (as in the PyTorch module).

    Returns shape (1,) float32 — same as Net.forward().
    """
    return _beale_pallas_raw(x1, x2)


def _beale_fwd(x1, x2):
    return _beale_pallas_raw(x1, x2), (x1.astype(jnp.float32), x2.astype(jnp.float32))


def _beale_bwd(res, g):
    x1, x2 = res
    x2sq = x2 * x2
    x2cu = x2sq * x2
    t1 = 1.5 - x1 + x1 * x2
    t2 = 2.25 - x1 + x1 * x2sq
    t3 = 2.625 - x1 + x1 * x2cu
    dx1 = 2.0 * (t1 * (x2 - 1.0) + t2 * (x2sq - 1.0) + t3 * (x2cu - 1.0))
    dx2 = 2.0 * (t1 * x1 + t2 * 2.0 * x1 * x2 + t3 * 3.0 * x1 * x2sq)
    return (g * dx1, g * dx2)


beale_pallas.defvjp(_beale_fwd, _beale_bwd)

beale_pallas_jit = jax.jit(beale_pallas)


def beale_ref(x1, x2):
    return ((1.5 - x1 + x1 * x2) ** 2
            + (2.25 - x1 + x1 * x2 ** 2) ** 2
            + (2.625 - x1 + x1 * x2 ** 3) ** 2)


if __name__ == "__main__":
    # Deterministic parameter initialization (equivalent to Net(x1, x2) with
    # concrete float values; no checkpoint loading).
    key = jax.random.PRNGKey(0)
    k1, k2 = jax.random.split(key)
    x1 = jax.random.uniform(k1, (1,), dtype=jnp.float32, minval=-2.0, maxval=2.0)
    x2 = jax.random.uniform(k2, (1,), dtype=jnp.float32, minval=-2.0, maxval=2.0)

    y = beale_pallas_jit(x1, x2)
    jax.block_until_ready(y)

    y_ref = beale_ref(x1, x2)
    assert y.shape == (1,) and y.dtype == jnp.float32
    assert jnp.allclose(y, y_ref, rtol=1e-5, atol=1e-5), (y, y_ref)

    print("KERNEL_OK")
</pallas_src>

<mosaic_0001>
module attributes {stable_mosaic.version = 11 : i64} {
  func.func @beale_kernel(%arg0: memref<1xf32, #tpu.memory_space<smem>>, %arg1: memref<1xf32, #tpu.memory_space<smem>>, %arg2: memref<1xf32, #tpu.memory_space<smem>>) attributes {dimension_semantics = [], scalar_prefetch = 0 : i64, scratch_operands = 0 : i64, tpu.core_type = #tpu.core_type<tc>} {
    %c0 = arith.constant 0 : index
    %0 = memref.load %arg0[%c0] : memref<1xf32, #tpu.memory_space<smem>>
    %c0_0 = arith.constant 0 : index
    %1 = memref.load %arg1[%c0_0] : memref<1xf32, #tpu.memory_space<smem>>
    %2 = arith.mulf %1, %1 : f32
    %3 = arith.mulf %2, %1 : f32
    %cst = arith.constant 1.500000e+00 : f32
    %4 = arith.subf %cst, %0 : f32
    %5 = arith.mulf %0, %1 : f32
    %6 = arith.addf %4, %5 : f32
    %cst_1 = arith.constant 2.250000e+00 : f32
    %7 = arith.subf %cst_1, %0 : f32
    %8 = arith.mulf %0, %2 : f32
    %9 = arith.addf %7, %8 : f32
    %cst_2 = arith.constant 2.625000e+00 : f32
    %10 = arith.subf %cst_2, %0 : f32
    %11 = arith.mulf %0, %3 : f32
    %12 = arith.addf %10, %11 : f32
    %13 = arith.mulf %6, %6 : f32
    %14 = arith.mulf %9, %9 : f32
    %15 = arith.addf %13, %14 : f32
    %16 = arith.mulf %12, %12 : f32
    %17 = arith.addf %15, %16 : f32
    %c0_3 = arith.constant 0 : index
    %18 = memref.load %arg2[%c0_3] : memref<1xf32, #tpu.memory_space<smem>>
    memref.store %17, %arg2[%c0_3] : memref<1xf32, #tpu.memory_space<smem>>
    return
  }
}

</mosaic_0001>

<llo_original>
// kernel: beale_pallas.1
$region0: #{beale_pallas.1}
  #allocation0 [shape = 'u32[]', space=smem, size = 0x4, offset = 0x4, fixed_abs, tag = 'smem constant byte address 0x4 - core index']
  #allocation1 [shape = 'u32[72,128]{1,0:T(1,128)}', space=vmem, size = 0x9000, scoped, tag = 'internal scratch']
  #allocation2 [shape = 'f32[1]{0:T(128)S(6)}', space=smem, size = 0x200, scoped, tag = 'scoped memory for beale_pallas.1']
  #allocation3 [shape = 'f32[1]{0:T(128)S(6)}', space=smem, size = 0x200, scoped, tag = 'scoped memory for beale_pallas.1']
  %s0 = inlined_call_operand.<no memory space> [shape: f32[1], index: 0, kind: input, shape index: {}]
  %s1 = inlined_call_operand.<no memory space> [shape: f32[1], index: 1, kind: input, shape index: {}]
  %s2 = inlined_call_operand.hbm [shape: f32[1], index: 2, kind: output, shape index: {}]
  %s3 = sld [smem:[#allocation0]]
  $region18: #{beale_pallas.1} parent=0
    _
  %s5 = ssub.s32 1, %s3
  %s6 = scalar_select 0, %s5, %s3
  %7 = sst [smem:[#allocation2]] %s0
  %8 = sst [smem:[#allocation3]] %s1
  $region1: #{beale_pallas.1} parent=0
    #allocation4 [shape = 'u8[512]{0}', space=smem, size = 0x200, scoped, tag = 'output window, operand 0, single buffered']
    #allocation5 [shape = 's32[1]{0}', space=sflag, size = 0x4, scoped, tag = 'scoped memory for beale_pallas.1']
    %9 = vsyncpa [#allocation5], 0
    // Predicated region
    $region2: #{beale_pallas.1} parent=1 // pred_check
      _
    $region3: #{beale_pallas.1} parent=1 // pred_check_branch
      %11 = sbr.rel (0) target = $region5
    $region4: #{beale_pallas.1} parent=1 // pred_region
      _
    $region5: #{beale_pallas.1} parent=1 // pred_fallthru
      _
    // Predicated region
    $region6: #{beale_pallas.1} parent=1 // pred_check
      _
    $region7: #{beale_pallas.1} parent=1 // pred_check_branch
      %13 = sbr.rel (0) target = $region9
    $region8: #{beale_pallas.1} parent=1 // pred_region
      _
    $region9: #{beale_pallas.1} parent=1 // pred_fallthru
      _
    %s14 = sld [smem:[#allocation2]]
    %s15 = sld [smem:[#allocation3]]
    %s16 = smul.f32 %s15, %s15
    %s17 = smul.f32 %s16, %s15
    %s18 = ssub.f32 1.5, %s14
    %s19 = smul.f32 %s14, %s15
    %s20 = sadd.f32 %s18, %s19
    %s21 = ssub.f32 2.25, %s14
    %s22 = smul.f32 %s14, %s16
    %s23 = sadd.f32 %s21, %s22
    %s24 = ssub.f32 2.625, %s14
    %s25 = smul.f32 %s14, %s17
    %s26 = sadd.f32 %s24, %s25
    %s27 = smul.f32 %s20, %s20
    %s28 = smul.f32 %s23, %s23
    %s29 = sadd.f32 %s27, %s28
    %s30 = smul.f32 %s26, %s26
    %s31 = sadd.f32 %s29, %s30
    %s32 = scalar_lea.smem [#allocation4], 0
    %33 = sst [smem:[%s32]] %s31
    // Predicated region
    $region10: #{beale_pallas.1} parent=1 // pred_check
      _
    $region11: #{beale_pallas.1} parent=1 // pred_check_branch
      %35 = sbr.rel (0) target = $region13
    $region12: #{beale_pallas.1} parent=1 // pred_region
      %37 = vsyncadd [#allocation5], 0
      %s39 = sshll.u32 %s2, 4
      %s40 = int_to_ptr.hbm [resolvable:$true] %s39
      %42 = dma.smem_to_hbm [#allocation4], 16, %s40, [#allocation5]
    $region13: #{beale_pallas.1} parent=1 // pred_fallthru
      _
    // Predicated region
    $region14: #{beale_pallas.1} parent=1 // pred_check
      _
    $region15: #{beale_pallas.1} parent=1 // pred_check_branch
      %44 = sbr.rel (0) target = $region17
    $region16: #{beale_pallas.1} parent=1 // pred_region
      %46 = dma.done [#allocation5], 16
    $region17: #{beale_pallas.1} parent=1 // pred_fallthru
      _
    %47 = sfence
    %48 = vsyncpa [#allocation5], 1

</llo_original>
